<compile_context>
chip_gen: v7x
topology: tpu7x:2x2x1
jax: 0.10.0
libtpu: 0.0.40
codegen_flags: <defaults>
</compile_context>

<pallas_src>
import functools

import jax
import jax.numpy as jnp
from jax.experimental import pallas as pl
from jax.experimental.pallas import tpu as pltpu


def _target_time_cols():
    """Generation-aware target for (batch rows x time cols) per grid step."""
    # ~8192 f32 columns (4ch in + 32ch out) ~= 1.2 MB per step; v7x's ~3.2 TB/s
    # HBM wants a bigger step to keep per-step overhead <~25%.
    try:
        info = pltpu.get_tpu_info()
        name = (str(getattr(info, "chip_version", ""))
                + str(getattr(info, "version", "")))
        if "7" in name:
            return 16384
    except Exception:
        pass
    return 8192


def _make_ecg_kernel(n_layers, tb, tl, chunk):
    """Fused kernel: x -> (W1 x + b1) -> ReLU -> ... -> (Wn x + bn).

    Processes the (tb, C, tl) block as tb sub-batch rows x lane-chunks of
    `chunk` columns so the live f32 intermediate stays vreg-sized.
    """
    n_full = tl // chunk
    rem = tl - n_full * chunk

    def kernel(*refs):
        # refs = (x_ref, w_1, b_1, ..., w_n, b_n, out_ref)
        x_ref = refs[0]
        out_ref = refs[-1]

        # Hoist weight loads/casts and bias lane-broadcasts out of the loops
        # (JAX does not CSE broadcast_in_dim; do them exactly once).
        ws, bs_full, bs_rem = [], [], []
        for i in range(n_layers):
            w = refs[1 + 2 * i][...].astype(jnp.float32)        # (C_out, C_in)
            b = refs[2 + 2 * i][...].astype(jnp.float32)        # (C_out, 1)
            ws.append(w)
            bs_full.append(jnp.broadcast_to(b, (b.shape[0], chunk)))
            if rem:
                bs_rem.append(jnp.broadcast_to(b, (b.shape[0], rem)))

        def run_chain(h, biases):
            for i in range(n_layers):
                # 1x1 conv == channel matmul; time stays on the lane axis.
                h = jnp.dot(ws[i], h, preferred_element_type=jnp.float32) + biases[i]
                if i < n_layers - 1:                            # ReLU after all but last
                    h = jnp.maximum(h, 0.0)
            return h

        # NOTE: on ragged last tiles the padded lanes hold garbage; this is
        # safe because every op here is lane-pointwise (the masked output
        # store discards them).  Any future cross-time op would need masking.
        for bb in range(tb):                                    # small unrolled sub-batch loop
            def do_chunk(off, size, biases, bb=bb):
                h = x_ref[bb, :, pl.ds(off, size)].astype(jnp.float32)  # (C_in, size)
                out_ref[bb, :, pl.ds(off, size)] = run_chain(h, biases).astype(out_ref.dtype)

            if n_full == 1:
                do_chunk(0, chunk, bs_full)
            else:
                @pl.loop(0, n_full)
                def _(c, do_chunk=do_chunk):
                    do_chunk(pl.multiple_of(c * chunk, chunk), chunk, bs_full)
            if rem:
                do_chunk(n_full * chunk, rem, bs_rem)

    return kernel


def init_ecg_embeddings_params(key, d_input, d_model):
    """Synthetic params mirroring the PyTorch __init__ shapes.

    Each Conv1d(in_c, out_c, 1) weight is stored as the squeezed (out_c, in_c)
    matrix; bias is stored as (out_c, 1) for lane-broadcast inside the kernel.
    """
    weights, biases = [], []
    in_channels = d_input
    out_channels = d_input
    while out_channels < d_model:
        out_channels = min(d_model, out_channels * 2)
        key, wk, bk = jax.random.split(key, 3)
        bound = 1.0 / jnp.sqrt(in_channels)  # torch fan_in-based uniform range
        w = jax.random.uniform(wk, (out_channels, in_channels), jnp.float32,
                               minval=-bound, maxval=bound)
        b = jax.random.uniform(bk, (out_channels, 1), jnp.float32,
                               minval=-bound, maxval=bound)
        weights.append(w)
        biases.append(b)
        in_channels = out_channels
    return weights, biases


def ecg_embeddings_forward(x_ncl, weights, biases, out_dtype=jnp.float32,
                           target_cols=None):
    """Forward pass.  x_ncl: [B, C_in, L] (same axis convention as torch).

    out_dtype: keep f32 to match torch; bf16 halves the dominant HBM stream
    if downstream consumers tolerate it.
    """
    B, c_in, L = x_ncl.shape
    n_layers = len(weights)
    if n_layers == 0:
        # Degenerate d_input >= d_model case: torch module applies no convs.
        return x_ncl
    d_out = weights[-1].shape[0]

    if target_cols is None:
        target_cols = _target_time_cols()

    # Tile selection: aim for >= ~0.5-1 MB of HBM traffic per grid step.
    if L <= target_cols:
        TL = L                                              # full extent: always legal
        TB = int(min(B, max(1, target_cols // max(L, 1))))  # fold batch rows
    else:
        TL = target_cols                                    # multiple of 128; ragged last
        TB = 1                                              # tile is masked by Pallas
    CHUNK = min(TL, 512)                                    # bounds vreg pressure

    grid = (pl.cdiv(B, TB), pl.cdiv(L, TL))

    x_spec = pl.BlockSpec((TB, c_in, TL), lambda b, l: (b, 0, l))
    out_spec = pl.BlockSpec((TB, d_out, TL), lambda b, l: (b, 0, l))

    params, param_specs = [], []
    for w, b in zip(weights, biases):
        params.extend([w, b])
        # Constant index_map -> weights/biases stay VMEM-resident, no re-DMA.
        param_specs.append(pl.BlockSpec(w.shape, lambda bi, li: (0, 0)))
        param_specs.append(pl.BlockSpec(b.shape, lambda bi, li: (0, 0)))

    out_isize = jnp.dtype(out_dtype).itemsize
    flops = 2 * B * L * sum(int(w.shape[0]) * int(w.shape[1]) for w in weights)
    bytes_accessed = (B * L * (c_in * x_ncl.dtype.itemsize + d_out * out_isize)
                      + sum(int(w.size + b.size) * 4 for w, b in zip(weights, biases)))

    compiler_kwargs = dict(dimension_semantics=("parallel", "parallel"))
    # Double-buffered in+out blocks; only raise scoped VMEM when actually
    # needed (v5e default is 16 MiB) and leave headroom on v7x (64 MiB phys).
    block_bytes = 2 * TB * TL * (c_in * x_ncl.dtype.itemsize + d_out * out_isize)
    if block_bytes > (12 << 20):
        compiler_kwargs["vmem_limit_bytes"] = int(min(block_bytes + (8 << 20), 48 << 20))

    out = pl.pallas_call(
        _make_ecg_kernel(n_layers, TB, TL, CHUNK),
        out_shape=jax.ShapeDtypeStruct((B, d_out, L), out_dtype),
        grid=grid,
        in_specs=[x_spec] + param_specs,
        out_specs=out_spec,
        compiler_params=pltpu.CompilerParams(**compiler_kwargs),
        cost_estimate=pl.CostEstimate(flops=int(flops), transcendentals=0,
                                      bytes_accessed=int(bytes_accessed)),
    )(x_ncl, *params)

    # TODO(synk): torch's `.detach().requires_grad_(True)` is autograd
    # bookkeeping with no value-level effect; no Pallas/JAX equivalent.
    return out  # [B, d_model, L]


def _reference_forward(x_ncl, weights, biases):
    """Pure-JAX reference matching the PyTorch semantics."""
    x = x_ncl.astype(jnp.float32)  # [B, C, L]
    n = len(weights)
    for i, (w, b) in enumerate(zip(weights, biases)):
        x = jnp.einsum('oc,bcl->bol', w, x) + b.reshape(1, -1, 1)
        if i < n - 1:
            x = jnp.maximum(x, 0.0)
    return x


if __name__ == "__main__":
    d_input, d_model = 4, 32

    key = jax.random.PRNGKey(0)
    key, pkey = jax.random.split(key)
    weights, biases = init_ecg_embeddings_params(pkey, d_input, d_model)

    def check(x, **kw):
        out = jax.block_until_ready(ecg_embeddings_forward(x, weights, biases, **kw))
        ref = _reference_forward(x, weights, biases)
        assert out.shape == (x.shape[0], d_model, x.shape[2]), out.shape
        assert jnp.allclose(out, ref, atol=1e-5, rtol=1e-5), (
            float(jnp.max(jnp.abs(out - ref))))

    # 1) Small primary shape (matches module expectations): batch-folded path.
    B, L = 2, 16
    key, xk = jax.random.split(key)
    check(jax.random.normal(xk, (B, d_input, L), jnp.float32))

    # 2) Medium L: single tile with a remainder lane-chunk (640 = 512 + 128).
    key, xk2 = jax.random.split(key)
    check(jax.random.normal(xk2, (2, d_input, 640), jnp.float32))

    # 3) Force the multi-tile + ragged-last-tile + chunk-loop path
    #    deterministically on every TPU generation via a small target.
    key, xk3 = jax.random.split(key)
    check(jax.random.normal(xk3, (1, d_input, 2500), jnp.float32),
          target_cols=1024)

    # 4) Degenerate d_input >= d_model: zero conv layers -> identity.
    w0, b0 = init_ecg_embeddings_params(jax.random.PRNGKey(1), 8, 8)
    key, xk4 = jax.random.split(key)
    x4 = jax.random.normal(xk4, (2, 8, 16), jnp.float32)
    out4 = jax.block_until_ready(ecg_embeddings_forward(x4, w0, b0))
    assert jnp.allclose(out4, x4)

    print("KERNEL_OK")
</pallas_src>

<mosaic_0001>
module attributes {stable_mosaic.version = 11 : i64} {
  func.func @kernel(%arg0: i32, %arg1: i32, %arg2: memref<2x4x16xf32, #tpu.memory_space<vmem>>, %arg3: memref<8x4xf32, #tpu.memory_space<vmem>>, %arg4: memref<8x1xf32, #tpu.memory_space<vmem>>, %arg5: memref<16x8xf32, #tpu.memory_space<vmem>>, %arg6: memref<16x1xf32, #tpu.memory_space<vmem>>, %arg7: memref<32x16xf32, #tpu.memory_space<vmem>>, %arg8: memref<32x1xf32, #tpu.memory_space<vmem>>, %arg9: memref<2x32x16xf32, #tpu.memory_space<vmem>>) attributes {dimension_semantics = [#tpu.dimension_semantics<parallel>, #tpu.dimension_semantics<parallel>], iteration_bounds = array<i64: 1, 1>, scalar_prefetch = 0 : i64, scratch_operands = 0 : i64, tpu.core_type = #tpu.core_type<tc>, window_params = [{transform_indices = @transform_0, window_bounds = array<i64: 2, 4, 16>}, {pipeline_mode = #tpu.pipeline_mode<synchronous>, transform_indices = @transform_1, window_bounds = array<i64: 8, 4>}, {pipeline_mode = #tpu.pipeline_mode<synchronous>, transform_indices = @transform_2, window_bounds = array<i64: 8, 1>}, {pipeline_mode = #tpu.pipeline_mode<synchronous>, transform_indices = @transform_3, window_bounds = array<i64: 16, 8>}, {pipeline_mode = #tpu.pipeline_mode<synchronous>, transform_indices = @transform_4, window_bounds = array<i64: 16, 1>}, {pipeline_mode = #tpu.pipeline_mode<synchronous>, transform_indices = @transform_5, window_bounds = array<i64: 32, 16>}, {pipeline_mode = #tpu.pipeline_mode<synchronous>, transform_indices = @transform_6, window_bounds = array<i64: 32, 1>}, {transform_indices = @transform_7, window_bounds = array<i64: 2, 32, 16>}]} {
    %c0 = arith.constant 0 : index
    %c0_0 = arith.constant 0 : index
    %0 = vector.load %arg3[%c0, %c0_0] : memref<8x4xf32, #tpu.memory_space<vmem>>, vector<8x4xf32>
    %c0_1 = arith.constant 0 : index
    %c0_2 = arith.constant 0 : index
    %1 = vector.load %arg4[%c0_1, %c0_2] : memref<8x1xf32, #tpu.memory_space<vmem>>, vector<8x1xf32>
    %2 = vector.shape_cast %1 : vector<8x1xf32> to vector<8x1xf32>
    %3 = vector.broadcast %2 : vector<8x1xf32> to vector<8x16xf32>
    %c0_3 = arith.constant 0 : index
    %c0_4 = arith.constant 0 : index
    %4 = vector.load %arg5[%c0_3, %c0_4] : memref<16x8xf32, #tpu.memory_space<vmem>>, vector<16x8xf32>
    %c0_5 = arith.constant 0 : index
    %c0_6 = arith.constant 0 : index
    %5 = vector.load %arg6[%c0_5, %c0_6] : memref<16x1xf32, #tpu.memory_space<vmem>>, vector<16x1xf32>
    %6 = vector.shape_cast %5 : vector<16x1xf32> to vector<16x1xf32>
    %7 = vector.broadcast %6 : vector<16x1xf32> to vector<16x16xf32>
    %c0_7 = arith.constant 0 : index
    %c0_8 = arith.constant 0 : index
    %8 = vector.load %arg7[%c0_7, %c0_8] : memref<32x16xf32, #tpu.memory_space<vmem>>, vector<32x16xf32>
    %c0_9 = arith.constant 0 : index
    %c0_10 = arith.constant 0 : index
    %9 = vector.load %arg8[%c0_9, %c0_10] : memref<32x1xf32, #tpu.memory_space<vmem>>, vector<32x1xf32>
    %10 = vector.shape_cast %9 : vector<32x1xf32> to vector<32x1xf32>
    %11 = vector.broadcast %10 : vector<32x1xf32> to vector<32x16xf32>
    %c0_11 = arith.constant 0 : index
    %c0_12 = arith.constant 0 : index
    %c0_13 = arith.constant 0 : index
    %12 = vector.load %arg2[%c0_11, %c0_12, %c0_13] : memref<2x4x16xf32, #tpu.memory_space<vmem>>, vector<1x4x16xf32>
    %13 = vector.shape_cast %12 : vector<1x4x16xf32> to vector<4x16xf32>
    %cst = arith.constant dense<0.000000e+00> : vector<8x16xf32>
    %14 = tpu.matmul %0, %13, %cst {dimension_numbers = #tpu.dot_dimension_numbers<[1], [0], [0], [1], [0, 0, 1, 1], [], []>} : vector<8x4xf32>, vector<4x16xf32>, vector<8x16xf32> -> vector<8x16xf32>
    %15 = arith.addf %14, %3 : vector<8x16xf32>
    %cst_14 = arith.constant 0.000000e+00 : f32
    %16 = vector.broadcast %cst_14 : f32 to vector<8x16xf32>
    %17 = arith.maximumf %15, %16 : vector<8x16xf32>
    %cst_15 = arith.constant dense<0.000000e+00> : vector<16x16xf32>
    %18 = tpu.matmul %4, %17, %cst_15 {dimension_numbers = #tpu.dot_dimension_numbers<[1], [0], [0], [1], [0, 0, 1, 1], [], []>} : vector<16x8xf32>, vector<8x16xf32>, vector<16x16xf32> -> vector<16x16xf32>
    %19 = arith.addf %18, %7 : vector<16x16xf32>
    %cst_16 = arith.constant 0.000000e+00 : f32
    %20 = vector.broadcast %cst_16 : f32 to vector<16x16xf32>
    %21 = arith.maximumf %19, %20 : vector<16x16xf32>
    %cst_17 = arith.constant dense<0.000000e+00> : vector<32x16xf32>
    %22 = tpu.matmul %8, %21, %cst_17 {dimension_numbers = #tpu.dot_dimension_numbers<[1], [0], [0], [1], [0, 0, 1, 1], [], []>} : vector<32x16xf32>, vector<16x16xf32>, vector<32x16xf32> -> vector<32x16xf32>
    %23 = arith.addf %22, %11 : vector<32x16xf32>
    %c0_18 = arith.constant 0 : index
    %c0_19 = arith.constant 0 : index
    %c0_20 = arith.constant 0 : index
    %24 = vector.load %arg9[%c0_18, %c0_19, %c0_20] : memref<2x32x16xf32, #tpu.memory_space<vmem>>, vector<1x32x16xf32>
    %25 = vector.shape_cast %24 : vector<1x32x16xf32> to vector<32x16xf32>
    %26 = vector.shape_cast %23 : vector<32x16xf32> to vector<1x32x16xf32>
    tpu.vector_store %arg9[%c0_18, %c0_19, %c0_20], %26 {strides = array<i32>} : memref<2x32x16xf32, #tpu.memory_space<vmem>>, vector<1x32x16xf32>,
    %c1 = arith.constant 1 : index
    %c0_21 = arith.constant 0 : index
    %c0_22 = arith.constant 0 : index
    %27 = vector.load %arg2[%c1, %c0_21, %c0_22] : memref<2x4x16xf32, #tpu.memory_space<vmem>>, vector<1x4x16xf32>
    %28 = vector.shape_cast %27 : vector<1x4x16xf32> to vector<4x16xf32>
    %cst_23 = arith.constant dense<0.000000e+00> : vector<8x16xf32>
    %29 = tpu.matmul %0, %28, %cst_23 {dimension_numbers = #tpu.dot_dimension_numbers<[1], [0], [0], [1], [0, 0, 1, 1], [], []>} : vector<8x4xf32>, vector<4x16xf32>, vector<8x16xf32> -> vector<8x16xf32>
    %30 = arith.addf %29, %3 : vector<8x16xf32>
    %cst_24 = arith.constant 0.000000e+00 : f32
    %31 = vector.broadcast %cst_24 : f32 to vector<8x16xf32>
    %32 = arith.maximumf %30, %31 : vector<8x16xf32>
    %cst_25 = arith.constant dense<0.000000e+00> : vector<16x16xf32>
    %33 = tpu.matmul %4, %32, %cst_25 {dimension_numbers = #tpu.dot_dimension_numbers<[1], [0], [0], [1], [0, 0, 1, 1], [], []>} : vector<16x8xf32>, vector<8x16xf32>, vector<16x16xf32> -> vector<16x16xf32>
    %34 = arith.addf %33, %7 : vector<16x16xf32>
    %cst_26 = arith.constant 0.000000e+00 : f32
    %35 = vector.broadcast %cst_26 : f32 to vector<16x16xf32>
    %36 = arith.maximumf %34, %35 : vector<16x16xf32>
    %cst_27 = arith.constant dense<0.000000e+00> : vector<32x16xf32>
    %37 = tpu.matmul %8, %36, %cst_27 {dimension_numbers = #tpu.dot_dimension_numbers<[1], [0], [0], [1], [0, 0, 1, 1], [], []>} : vector<32x16xf32>, vector<16x16xf32>, vector<32x16xf32> -> vector<32x16xf32>
    %38 = arith.addf %37, %11 : vector<32x16xf32>
    %c1_28 = arith.constant 1 : index
    %c0_29 = arith.constant 0 : index
    %c0_30 = arith.constant 0 : index
    %39 = vector.load %arg9[%c1_28, %c0_29, %c0_30] : memref<2x32x16xf32, #tpu.memory_space<vmem>>, vector<1x32x16xf32>
    %40 = vector.shape_cast %39 : vector<1x32x16xf32> to vector<32x16xf32>
    %41 = vector.shape_cast %38 : vector<32x16xf32> to vector<1x32x16xf32>
    tpu.vector_store %arg9[%c1_28, %c0_29, %c0_30], %41 {strides = array<i32>} : memref<2x32x16xf32, #tpu.memory_space<vmem>>, vector<1x32x16xf32>,
    return
  }
  func.func @transform_0(%arg0: i32, %arg1: i32) -> (i32, i32, i32) {
    %c0_i32 = arith.constant 0 : i32
    %c0_i32_0 = arith.constant 0 : i32
    return %arg0, %c0_i32, %arg1 : i32, i32, i32
  }
  func.func @transform_1(%arg0: i32, %arg1: i32) -> (i32, i32) {
    %c0_i32 = arith.constant 0 : i32
    %c0_i32_0 = arith.constant 0 : i32
    %c0_i32_1 = arith.constant 0 : i32
    return %c0_i32, %c0_i32_0 : i32, i32
  }
  func.func @transform_2(%arg0: i32, %arg1: i32) -> (i32, i32) {
    %c0_i32 = arith.constant 0 : i32
    %c0_i32_0 = arith.constant 0 : i32
    %c0_i32_1 = arith.constant 0 : i32
    return %c0_i32, %c0_i32_0 : i32, i32
  }
  func.func @transform_3(%arg0: i32, %arg1: i32) -> (i32, i32) {
    %c0_i32 = arith.constant 0 : i32
    %c0_i32_0 = arith.constant 0 : i32
    %c0_i32_1 = arith.constant 0 : i32
    return %c0_i32, %c0_i32_0 : i32, i32
  }
  func.func @transform_4(%arg0: i32, %arg1: i32) -> (i32, i32) {
    %c0_i32 = arith.constant 0 : i32
    %c0_i32_0 = arith.constant 0 : i32
    %c0_i32_1 = arith.constant 0 : i32
    return %c0_i32, %c0_i32_0 : i32, i32
  }
  func.func @transform_5(%arg0: i32, %arg1: i32) -> (i32, i32) {
    %c0_i32 = arith.constant 0 : i32
    %c0_i32_0 = arith.constant 0 : i32
    %c0_i32_1 = arith.constant 0 : i32
    return %c0_i32, %c0_i32_0 : i32, i32
  }
  func.func @transform_6(%arg0: i32, %arg1: i32) -> (i32, i32) {
    %c0_i32 = arith.constant 0 : i32
    %c0_i32_0 = arith.constant 0 : i32
    %c0_i32_1 = arith.constant 0 : i32
    return %c0_i32, %c0_i32_0 : i32, i32
  }
  func.func @transform_7(%arg0: i32, %arg1: i32) -> (i32, i32, i32) {
    %c0_i32 = arith.constant 0 : i32
    %c0_i32_0 = arith.constant 0 : i32
    return %arg0, %c0_i32, %arg1 : i32, i32, i32
  }
}

</mosaic_0001>

<llo_original>
// kernel: tpu_custom_call.1
$region0: #{tpu_custom_call.1}
  #allocation0 [shape = 'u32[]', space=smem, size = 0x4, offset = 0x4, fixed_abs, tag = 'smem constant byte address 0x4 - core index']
  #allocation1 [shape = 'u32[144,128]{1,0:T(1,128)}', space=vmem, size = 0x12000, scoped, tag = 'internal scratch']
  %s0 = inlined_call_operand.vmem [shape: f32[2,4,16], index: 0, kind: input, shape index: {}]
  %s1 = inlined_call_operand.vmem [shape: f32[8,4], index: 1, kind: input, shape index: {}]
  %s2 = inlined_call_operand.vmem [shape: f32[8,1], index: 2, kind: input, shape index: {}]
  %s3 = inlined_call_operand.vmem [shape: f32[16,8], index: 3, kind: input, shape index: {}]
  %s4 = inlined_call_operand.vmem [shape: f32[16,1], index: 4, kind: input, shape index: {}]
  %s5 = inlined_call_operand.vmem [shape: f32[32,16], index: 5, kind: input, shape index: {}]
  %s6 = inlined_call_operand.vmem [shape: f32[32,1], index: 6, kind: input, shape index: {}]
  %s7 = inlined_call_operand.vmem [shape: f32[2,32,16], index: 7, kind: output, shape index: {}]
  %s8 = sld [smem:[#allocation0]]
  $region38: #{tpu_custom_call.1} parent=0
    _
  %s10 = ssub.s32 1, %s8
  %s11 = scalar_select 0, %s10, %s8
  // Predicated region
  $region2: #{tpu_custom_call.1} parent=0 // pred_check
    _
  $region3: #{tpu_custom_call.1} parent=0 // pred_check_branch
    %13 = sbr.rel (0) target = $region5
  $region4: #{tpu_custom_call.1} parent=0 // pred_region
    _
  $region5: #{tpu_custom_call.1} parent=0 // pred_fallthru
    _
  // Predicated region
  $region6: #{tpu_custom_call.1} parent=0 // pred_check
    _
  $region7: #{tpu_custom_call.1} parent=0 // pred_check_branch
    %15 = sbr.rel (0) target = $region9
  $region8: #{tpu_custom_call.1} parent=0 // pred_region
    _
  $region9: #{tpu_custom_call.1} parent=0 // pred_fallthru
    _
  // Predicated region
  $region10: #{tpu_custom_call.1} parent=0 // pred_check
    _
  $region11: #{tpu_custom_call.1} parent=0 // pred_check_branch
    %17 = sbr.rel (0) target = $region13
  $region12: #{tpu_custom_call.1} parent=0 // pred_region
    _
  $region13: #{tpu_custom_call.1} parent=0 // pred_fallthru
    _
  // Predicated region
  $region14: #{tpu_custom_call.1} parent=0 // pred_check
    _
  $region15: #{tpu_custom_call.1} parent=0 // pred_check_branch
    %19 = sbr.rel (0) target = $region17
  $region16: #{tpu_custom_call.1} parent=0 // pred_region
    _
  $region17: #{tpu_custom_call.1} parent=0 // pred_fallthru
    _
  // Predicated region
  $region18: #{tpu_custom_call.1} parent=0 // pred_check
    _
  $region19: #{tpu_custom_call.1} parent=0 // pred_check_branch
    %21 = sbr.rel (0) target = $region21
  $region20: #{tpu_custom_call.1} parent=0 // pred_region
    _
  $region21: #{tpu_custom_call.1} parent=0 // pred_fallthru
    _
  // Predicated region
  $region22: #{tpu_custom_call.1} parent=0 // pred_check
    _
  $region23: #{tpu_custom_call.1} parent=0 // pred_check_branch
    %23 = sbr.rel (0) target = $region25
  $region24: #{tpu_custom_call.1} parent=0 // pred_region
    _
  $region25: #{tpu_custom_call.1} parent=0 // pred_fallthru
    _
  // Predicated region
  $region26: #{tpu_custom_call.1} parent=0 // pred_check
    _
  $region27: #{tpu_custom_call.1} parent=0 // pred_check_branch
    %25 = sbr.rel (0) target = $region29
  $region28: #{tpu_custom_call.1} parent=0 // pred_region
    _
  $region29: #{tpu_custom_call.1} parent=0 // pred_fallthru
    _
  %v26 = vld [vmem:[%s1] sm:$0xff]
  %v27 = vld [vmem:[%s2] sm:$0xff]
  %29 = vset.pattern.permute.xlu0 0
  %30 = vperm.xlu0 %29, %v27
  %v31 = vpop.permute.xlu0 %30
  %v33 = vld [vmem:[%s3] sm:$0xff]
  %v34 = vld [vmem:[%s3 + $0x8] sm:$0xff]
  %v35 = vld [vmem:[%s4] sm:$0xff]
  %v36 = vld [vmem:[%s4 + $0x8] sm:$0xff]
  %38 = vset.pattern.permute.xlu0 0
  %39 = vperm.xlu0 %38, %v35
  %v40 = vpop.permute.xlu0 %39
  %43 = vset.pattern.permute.xlu0 0
  %44 = vperm.xlu0 %43, %v36
  %v45 = vpop.permute.xlu0 %44
  %v47 = vld [vmem:[%s5] sm:$0xff]
  %v48 = vld [vmem:[%s5 + $0x8] sm:$0xff]
  %v49 = vld [vmem:[%s5 + $0x10] sm:$0xff]
  %v50 = vld [vmem:[%s5 + $0x18] sm:$0xff]
  %v51 = vld [vmem:[%s6] sm:$0xff]
  %v52 = vld [vmem:[%s6 + $0x8] sm:$0xff]
  %v53 = vld [vmem:[%s6 + $0x10] sm:$0xff]
  %v54 = vld [vmem:[%s6 + $0x18] sm:$0xff]
  %56 = vset.pattern.permute.xlu0 0
  %57 = vperm.xlu0 %56, %v51
  %v58 = vpop.permute.xlu0 %57
  %61 = vset.pattern.permute.xlu0 0
  %62 = vperm.xlu0 %61, %v52
  %v63 = vpop.permute.xlu0 %62
  %66 = vset.pattern.permute.xlu0 0
  %67 = vperm.xlu0 %66, %v53
  %v68 = vpop.permute.xlu0 %67
  %71 = vset.pattern.permute.xlu0 0
  %72 = vperm.xlu0 %71, %v54
  %v73 = vpop.permute.xlu0 %72
  %v75 = vld [vmem:[%s0] sm:$0xf]
  %vm76 = vcmask 31744
  %v78 = vsel %vm76, %v26, 0
  %vm80 = vcmask 1043456
  %v82 = vsel %vm80, %v75, 0
  %84 = vmatprep.subr.mxu0 0.0
  %85 = vmatpush1.msra.mxu0 %v82
  %86 = vmatprep.subr.mxu0 0.0
  %87 = vmatpush1.msra.mxu0 0.0
  %88 = vmatprep.subr.mxu0 0.0
  %89 = vmatpush1.msra.mxu0 0.0
  %90 = vmatprep.subr.mxu0 0.0
  %91 = vmatpush1.msra.mxu0 0.0
  %92 = vmatprep.subr.mxu0 0.0
  %93 = vmatpush1.msra.mxu0 0.0
  %94 = vmatprep.subr.mxu0 0.0
  %95 = vmatpush1.msra.mxu0 0.0
  %96 = vmatprep.subr.mxu0 0.0
  %97 = vmatpush1.msra.mxu0 0.0
  %98 = vmatprep.subr.mxu0 0.0
  %99 = vmatpush1.msra.mxu0 0.0
  %100 = vmatprep.subr.mxu0 0.0
  %101 = vmatpush1.msra.mxu0 0.0
  %102 = vmatprep.subr.mxu0 0.0
  %103 = vmatpush1.msra.mxu0 0.0
  %104 = vmatprep.subr.mxu0 0.0
  %105 = vmatpush1.msra.mxu0 0.0
  %106 = vmatprep.subr.mxu0 0.0
  %107 = vmatpush1.msra.mxu0 0.0
  %108 = vmatprep.subr.mxu0 0.0
  %109 = vmatpush1.msra.mxu0 0.0
  %110 = vmatprep.subr.mxu0 0.0
  %111 = vmatpush1.msra.mxu0 0.0
  %112 = vmatprep.subr.mxu0 0.0
  %113 = vmatpush1.msra.mxu0 0.0
  %114 = vmatprep.subr.mxu0 0.0
  %115 = vmatpush1.msra.mxu0 0.0
  %116 = vmatprep.subr.mxu0 0.0
  %117 = vmatpush1.msra.mxu0 0.0
  %118 = vmatprep.subr.mxu0 0.0
  %119 = vmatpush1.msra.mxu0 0.0
  %120 = vmatprep.subr.mxu0 0.0
  %121 = vmatpush1.msra.mxu0 0.0
  %122 = vmatprep.subr.mxu0 0.0
  %123 = vmatpush1.msra.mxu0 0.0
  %124 = vmatprep.subr.mxu0 0.0
  %125 = vmatpush1.msra.mxu0 0.0
  %126 = vmatprep.subr.mxu0 0.0
  %127 = vmatpush1.msra.mxu0 0.0
  %128 = vmatprep.subr.mxu0 0.0
  %129 = vmatpush1.msra.mxu0 0.0
  %130 = vmatprep.subr.mxu0 0.0
  %131 = vmatpush1.msra.mxu0 0.0
  %132 = vmatprep.subr.mxu0 0.0
  %133 = vmatpush1.msra.mxu0 0.0
  %134 = vmatprep.subr.mxu0 0.0
  %135 = vmatpush1.msra.mxu0 0.0
  %136 = vmatprep.subr.mxu0 0.0
  %137 = vmatpush1.msra.mxu0 0.0
  %138 = vmatprep.subr.mxu0 0.0
  %139 = vmatpush1.msra.mxu0 0.0
  %140 = vmatprep.subr.mxu0 0.0
  %141 = vmatpush1.msra.mxu0 0.0
  %142 = vmatprep.subr.mxu0 0.0
  %143 = vmatpush1.msra.mxu0 0.0
  %144 = vmatprep.subr.mxu0 0.0
  %145 = vmatpush1.msra.mxu0 0.0
  %146 = vmatprep.subr.mxu0 0.0
  %147 = vmatpush1.msra.mxu0 0.0
  %148 = vmatprep.mubr.f32.mxu0 0.0
  %149 = vmatmul.mubr.f32.gmra.mrb[0].mxu0 %v78
  %v150 = vpop.f32.mrb[0].mxu0
  %v151 = vadd.f32 %v31, %v150
  %v152 = vpop.f32.mrb[0].mxu0
  %153 = vdwg.mxu0
  %v154 = vmax.f32 %v151, 0.0
  %vm155 = vcmask 64512
  %v157 = vsel %vm155, %v33, 0
  %v160 = vsel %vm155, %v34, 0
  %162 = vmatprep.subr.mxu0 0.0
  %163 = vmatpush1.msra.mxu0 %v154
  %164 = vmatprep.subr.mxu0 0.0
  %165 = vmatpush1.msra.mxu0 0.0
  %166 = vmatprep.subr.mxu0 0.0
  %167 = vmatpush1.msra.mxu0 0.0
  %168 = vmatprep.subr.mxu0 0.0
  %169 = vmatpush1.msra.mxu0 0.0
  %170 = vmatprep.subr.mxu0 0.0
  %171 = vmatpush1.msra.mxu0 0.0
  %172 = vmatprep.subr.mxu0 0.0
  %173 = vmatpush1.msra.mxu0 0.0
  %174 = vmatprep.subr.mxu0 0.0
  %175 = vmatpush1.msra.mxu0 0.0
  %176 = vmatprep.subr.mxu0 0.0
  %177 = vmatpush1.msra.mxu0 0.0
  %178 = vmatprep.subr.mxu0 0.0
  %179 = vmatpush1.msra.mxu0 0.0
  %180 = vmatprep.subr.mxu0 0.0
  %181 = vmatpush1.msra.mxu0 0.0
  %182 = vmatprep.subr.mxu0 0.0
  %183 = vmatpush1.msra.mxu0 0.0
  %184 = vmatprep.subr.mxu0 0.0
  %185 = vmatpush1.msra.mxu0 0.0
  %186 = vmatprep.subr.mxu0 0.0
  %187 = vmatpush1.msra.mxu0 0.0
  %188 = vmatprep.subr.mxu0 0.0
  %189 = vmatpush1.msra.mxu0 0.0
  %190 = vmatprep.subr.mxu0 0.0
  %191 = vmatpush1.msra.mxu0 0.0
  %192 = vmatprep.subr.mxu0 0.0
  %193 = vmatpush1.msra.mxu0 0.0
  %194 = vmatprep.subr.mxu0 0.0
  %195 = vmatpush1.msra.mxu0 0.0
  %196 = vmatprep.subr.mxu0 0.0
  %197 = vmatpush1.msra.mxu0 0.0
  %198 = vmatprep.subr.mxu0 0.0
  %199 = vmatpush1.msra.mxu0 0.0
  %200 = vmatprep.subr.mxu0 0.0
  %201 = vmatpush1.msra.mxu0 0.0
  %202 = vmatprep.subr.mxu0 0.0
  %203 = vmatpush1.msra.mxu0 0.0
  %204 = vmatprep.subr.mxu0 0.0
  %205 = vmatpush1.msra.mxu0 0.0
  %206 = vmatprep.subr.mxu0 0.0
  %207 = vmatpush1.msra.mxu0 0.0
  %208 = vmatprep.subr.mxu0 0.0
  %209 = vmatpush1.msra.mxu0 0.0
  %210 = vmatprep.subr.mxu0 0.0
  %211 = vmatpush1.msra.mxu0 0.0
  %212 = vmatprep.subr.mxu0 0.0
  %213 = vmatpush1.msra.mxu0 0.0
  %214 = vmatprep.subr.mxu0 0.0
  %215 = vmatpush1.msra.mxu0 0.0
  %216 = vmatprep.subr.mxu0 0.0
  %217 = vmatpush1.msra.mxu0 0.0
  %218 = vmatprep.subr.mxu0 0.0
  %219 = vmatpush1.msra.mxu0 0.0
  %220 = vmatprep.subr.mxu0 0.0
  %221 = vmatpush1.msra.mxu0 0.0
  %222 = vmatprep.subr.mxu0 0.0
  %223 = vmatpush1.msra.mxu0 0.0
  %224 = vmatprep.subr.mxu0 0.0
  %225 = vmatpush1.msra.mxu0 0.0
  %226 = vmatprep.mubr.f32.mxu0 0.0
  %227 = vmatmul.mubr.f32.gmra.mrb[0].mxu0 %v157
  %v228 = vpop.f32.mrb[0].mxu0
  %v229 = vadd.f32 %v40, %v228
  %v230 = vpop.f32.mrb[0].mxu0
  %231 = vmatprep.mubr.f32.mxu0 0.0
  %232 = vmatmul.mubr.f32.gmra.mrb[0].mxu0 %v160
  %v233 = vpop.f32.mrb[0].mxu0
  %v234 = vadd.f32 %v45, %v233
  %v235 = vpop.f32.mrb[0].mxu0
  %236 = vdwg.mxu0
  %v237 = vmax.f32 %v229, 0.0
  %v238 = vmax.f32 %v234, 0.0
  %vm239 = vcmask 130048
  %v241 = vsel %vm239, %v47, 0
  %v244 = vsel %vm239, %v48, 0
  %v247 = vsel %vm239, %v49, 0
  %v250 = vsel %vm239, %v50, 0
  %252 = vmatprep.subr.mxu0 0.0
  %253 = vmatpush1.msra.mxu0 %v237
  %254 = vmatprep.subr.mxu0 0.0
  %255 = vmatpush1.msra.mxu0 %v238
  %256 = vmatprep.subr.mxu0 0.0
  %257 = vmatpush1.msra.mxu0 0.0
  %258 = vmatprep.subr.mxu0 0.0
  %259 = vmatpush1.msra.mxu0 0.0
  %260 = vmatprep.subr.mxu0 0.0
  %261 = vmatpush1.msra.mxu0 0.0
  %262 = vmatprep.subr.mxu0 0.0
  %263 = vmatpush1.msra.mxu0 0.0
  %264 = vmatprep.subr.mxu0 0.0
  %265 = vmatpush1.msra.mxu0 0.0
  %266 = vmatprep.subr.mxu0 0.0
  %267 = vmatpush1.msra.mxu0 0.0
  %268 = vmatprep.subr.mxu0 0.0
  %269 = vmatpush1.msra.mxu0 0.0
  %270 = vmatprep.subr.mxu0 0.0
  %271 = vmatpush1.msra.mxu0 0.0
  %272 = vmatprep.subr.mxu0 0.0
  %273 = vmatpush1.msra.mxu0 0.0
  %274 = vmatprep.subr.mxu0 0.0
  %275 = vmatpush1.msra.mxu0 0.0
  %276 = vmatprep.subr.mxu0 0.0
  %277 = vmatpush1.msra.mxu0 0.0
  %278 = vmatprep.subr.mxu0 0.0
  %279 = vmatpush1.msra.mxu0 0.0
  %280 = vmatprep.subr.mxu0 0.0
  %281 = vmatpush1.msra.mxu0 0.0
  %282 = vmatprep.subr.mxu0 0.0
  %283 = vmatpush1.msra.mxu0 0.0
  %284 = vmatprep.subr.mxu0 0.0
  %285 = vmatpush1.msra.mxu0 0.0
  %286 = vmatprep.subr.mxu0 0.0
  %287 = vmatpush1.msra.mxu0 0.0
  %288 = vmatprep.subr.mxu0 0.0
  %289 = vmatpush1.msra.mxu0 0.0
  %290 = vmatprep.subr.mxu0 0.0
  %291 = vmatpush1.msra.mxu0 0.0
  %292 = vmatprep.subr.mxu0 0.0
  %293 = vmatpush1.msra.mxu0 0.0
  %294 = vmatprep.subr.mxu0 0.0
  %295 = vmatpush1.msra.mxu0 0.0
  %296 = vmatprep.subr.mxu0 0.0
  %297 = vmatpush1.msra.mxu0 0.0
  %298 = vmatprep.subr.mxu0 0.0
  %299 = vmatpush1.msra.mxu0 0.0
  %300 = vmatprep.subr.mxu0 0.0
  %301 = vmatpush1.msra.mxu0 0.0
  %302 = vmatprep.subr.mxu0 0.0
  %303 = vmatpush1.msra.mxu0 0.0
  %304 = vmatprep.subr.mxu0 0.0
  %305 = vmatpush1.msra.mxu0 0.0
  %306 = vmatprep.subr.mxu0 0.0
  %307 = vmatpush1.msra.mxu0 0.0
  %308 = vmatprep.subr.mxu0 0.0
  %309 = vmatpush1.msra.mxu0 0.0
  %310 = vmatprep.subr.mxu0 0.0
  %311 = vmatpush1.msra.mxu0 0.0
  %312 = vmatprep.subr.mxu0 0.0
  %313 = vmatpush1.msra.mxu0 0.0
  %314 = vmatprep.subr.mxu0 0.0
  %315 = vmatpush1.msra.mxu0 0.0
  %316 = vmatprep.mubr.f32.mxu0 0.0
  %317 = vmatmul.mubr.f32.gmra.mrb[0].mxu0 %v241
  %v318 = vpop.f32.mrb[0].mxu0
  %v319 = vadd.f32 %v58, %v318
  %v320 = vpop.f32.mrb[0].mxu0
  %321 = vmatprep.mubr.f32.mxu0 0.0
  %322 = vmatmul.mubr.f32.gmra.mrb[0].mxu0 %v244
  %v323 = vpop.f32.mrb[0].mxu0
  %v324 = vadd.f32 %v63, %v323
  %v325 = vpop.f32.mrb[0].mxu0
  %326 = vmatprep.mubr.f32.mxu0 0.0
  %327 = vmatmul.mubr.f32.gmra.mrb[0].mxu0 %v247
  %v328 = vpop.f32.mrb[0].mxu0
  %v329 = vadd.f32 %v68, %v328
  %v330 = vpop.f32.mrb[0].mxu0
  %331 = vmatprep.mubr.f32.mxu0 0.0
  %332 = vmatmul.mubr.f32.gmra.mrb[0].mxu0 %v250
  %v333 = vpop.f32.mrb[0].mxu0
  %v334 = vadd.f32 %v73, %v333
  %v335 = vpop.f32.mrb[0].mxu0
  %336 = vdwg.mxu0
  %337 = vst.msk [vmem:[%s7] sm:$0xff] %vm239, %v319
  %338 = vst.msk [vmem:[%s7 + $0x8] sm:$0xff] %vm239, %v324
  %339 = vst.msk [vmem:[%s7 + $0x10] sm:$0xff] %vm239, %v329
  %340 = vst.msk [vmem:[%s7 + $0x18] sm:$0xff] %vm239, %v334
  %s341 = scalar_lea.vmem %s0, 4
  %v342 = vld [vmem:[%s341] sm:$0xf]
  %v344 = vsel %vm80, %v342, 0
  %346 = vmatprep.subr.mxu0 0.0
  %347 = vmatpush1.msra.mxu0 %v344
  %348 = vmatprep.subr.mxu0 0.0
  %349 = vmatpush1.msra.mxu0 0.0
  %350 = vmatprep.subr.mxu0 0.0
  %351 = vmatpush1.msra.mxu0 0.0
  %352 = vmatprep.subr.mxu0 0.0
  %353 = vmatpush1.msra.mxu0 0.0
  %354 = vmatprep.subr.mxu0 0.0
  %355 = vmatpush1.msra.mxu0 0.0
  %356 = vmatprep.subr.mxu0 0.0
  %357 = vmatpush1.msra.mxu0 0.0
  %358 = vmatprep.subr.mxu0 0.0
  %359 = vmatpush1.msra.mxu0 0.0
  %360 = vmatprep.subr.mxu0 0.0
  %361 = vmatpush1.msra.mxu0 0.0
  %362 = vmatprep.subr.mxu0 0.0
  %363 = vmatpush1.msra.mxu0 0.0
  %364 = vmatprep.subr.mxu0 0.0
  %365 = vmatpush1.msra.mxu0 0.0
  %366 = vmatprep.subr.mxu0 0.0
  %367 = vmatpush1.msra.mxu0 0.0
  %368 = vmatprep.subr.mxu0 0.0
  %369 = vmatpush1.msra.mxu0 0.0
  %370 = vmatprep.subr.mxu0 0.0
  %371 = vmatpush1.msra.mxu0 0.0
  %372 = vmatprep.subr.mxu0 0.0
  %373 = vmatpush1.msra.mxu0 0.0
  %374 = vmatprep.subr.mxu0 0.0
  %375 = vmatpush1.msra.mxu0 0.0
  %376 = vmatprep.subr.mxu0 0.0
  %377 = vmatpush1.msra.mxu0 0.0
  %378 = vmatprep.subr.mxu0 0.0
  %379 = vmatpush1.msra.mxu0 0.0
  %380 = vmatprep.subr.mxu0 0.0
  %381 = vmatpush1.msra.mxu0 0.0
  %382 = vmatprep.subr.mxu0 0.0
  %383 = vmatpush1.msra.mxu0 0.0
  %384 = vmatprep.subr.mxu0 0.0
  %385 = vmatpush1.msra.mxu0 0.0
  %386 = vmatprep.subr.mxu0 0.0
  %387 = vmatpush1.msra.mxu0 0.0
  %388 = vmatprep.subr.mxu0 0.0
  %389 = vmatpush1.msra.mxu0 0.0
  %390 = vmatprep.subr.mxu0 0.0
  %391 = vmatpush1.msra.mxu0 0.0
  %392 = vmatprep.subr.mxu0 0.0
  %393 = vmatpush1.msra.mxu0 0.0
  %394 = vmatprep.subr.mxu0 0.0
  %395 = vmatpush1.msra.mxu0 0.0
  %396 = vmatprep.subr.mxu0 0.0
  %397 = vmatpush1.msra.mxu0 0.0
  %398 = vmatprep.subr.mxu0 0.0
  %399 = vmatpush1.msra.mxu0 0.0
  %400 = vmatprep.subr.mxu0 0.0
  %401 = vmatpush1.msra.mxu0 0.0
  %402 = vmatprep.subr.mxu0 0.0
  %403 = vmatpush1.msra.mxu0 0.0
  %404 = vmatprep.subr.mxu0 0.0
  %405 = vmatpush1.msra.mxu0 0.0
  %406 = vmatprep.subr.mxu0 0.0
  %407 = vmatpush1.msra.mxu0 0.0
  %408 = vmatprep.subr.mxu0 0.0
  %409 = vmatpush1.msra.mxu0 0.0
  %410 = vmatprep.mubr.f32.mxu0 0.0
  %411 = vmatmul.mubr.f32.gmra.mrb[0].mxu0 %v78
  %v412 = vpop.f32.mrb[0].mxu0
  %v413 = vadd.f32 %v31, %v412
  %v414 = vpop.f32.mrb[0].mxu0
  %415 = vdwg.mxu0
  %v416 = vmax.f32 %v413, 0.0
  %417 = vmatprep.subr.mxu0 0.0
  %418 = vmatpush1.msra.mxu0 %v416
  %419 = vmatprep.subr.mxu0 0.0
  %420 = vmatpush1.msra.mxu0 0.0
  %421 = vmatprep.subr.mxu0 0.0
  %422 = vmatpush1.msra.mxu0 0.0
  %423 = vmatprep.subr.mxu0 0.0
  %424 = vmatpush1.msra.mxu0 0.0
  %425 = vmatprep.subr.mxu0 0.0
  %426 = vmatpush1.msra.mxu0 0.0
  %427 = vmatprep.subr.mxu0 0.0
  %428 = vmatpush1.msra.mxu0 0.0
  %429 = vmatprep.subr.mxu0 0.0
  %430 = vmatpush1.msra.mxu0 0.0
  %431 = vmatprep.subr.mxu0 0.0
  %432 = vmatpush1.msra.mxu0 0.0
  %433 = vmatprep.subr.mxu0 0.0
  %434 = vmatpush1.msra.mxu0 0.0
  %435 = vmatprep.subr.mxu0 0.0
  %436 = vmatpush1.msra.mxu0 0.0
  %437 = vmatprep.subr.mxu0 0.0
  %438 = vmatpush1.msra.mxu0 0.0
  %439 = vmatprep.subr.mxu0 0.0
  %440 = vmatpush1.msra.mxu0 0.0
  %441 = vmatprep.subr.mxu0 0.0
  %442 = vmatpush1.msra.mxu0 0.0
  %443 = vmatprep.subr.mxu0 0.0
  %444 = vmatpush1.msra.mxu0 0.0
  %445 = vmatprep.subr.mxu0 0.0
  %446 = vmatpush1.msra.mxu0 0.0
  %447 = vmatprep.subr.mxu0 0.0
  %448 = vmatpush1.msra.mxu0 0.0
  %449 = vmatprep.subr.mxu0 0.0
  %450 = vmatpush1.msra.mxu0 0.0
  %451 = vmatprep.subr.mxu0 0.0
  %452 = vmatpush1.msra.mxu0 0.0
  %453 = vmatprep.subr.mxu0 0.0
  %454 = vmatpush1.msra.mxu0 0.0
  %455 = vmatprep.subr.mxu0 0.0
  %456 = vmatpush1.msra.mxu0 0.0
  %457 = vmatprep.subr.mxu0 0.0
  %458 = vmatpush1.msra.mxu0 0.0
  %459 = vmatprep.subr.mxu0 0.0
  %460 = vmatpush1.msra.mxu0 0.0
  %461 = vmatprep.subr.mxu0 0.0
  %462 = vmatpush1.msra.mxu0 0.0
  %463 = vmatprep.subr.mxu0 0.0
  %464 = vmatpush1.msra.mxu0 0.0
  %465 = vmatprep.subr.mxu0 0.0
  %466 = vmatpush1.msra.mxu0 0.0
  %467 = vmatprep.subr.mxu0 0.0
  %468 = vmatpush1.msra.mxu0 0.0
  %469 = vmatprep.subr.mxu0 0.0
  %470 = vmatpush1.msra.mxu0 0.0
  %471 = vmatprep.subr.mxu0 0.0
  %472 = vmatpush1.msra.mxu0 0.0
  %473 = vmatprep.subr.mxu0 0.0
  %474 = vmatpush1.msra.mxu0 0.0
  %475 = vmatprep.subr.mxu0 0.0
  %476 = vmatpush1.msra.mxu0 0.0
  %477 = vmatprep.subr.mxu0 0.0
  %478 = vmatpush1.msra.mxu0 0.0
  %479 = vmatprep.subr.mxu0 0.0
  %480 = vmatpush1.msra.mxu0 0.0
  %481 = vmatprep.mubr.f32.mxu0 0.0
  %482 = vmatmul.mubr.f32.gmra.mrb[0].mxu0 %v157
  %v483 = vpop.f32.mrb[0].mxu0
  %v484 = vadd.f32 %v40, %v483
  %v485 = vpop.f32.mrb[0].mxu0
  %486 = vmatprep.mubr.f32.mxu0 0.0
  %487 = vmatmul.mubr.f32.gmra.mrb[0].mxu0 %v160
  %v488 = vpop.f32.mrb[0].mxu0
  %v489 = vadd.f32 %v45, %v488
  %v490 = vpop.f32.mrb[0].mxu0
  %491 = vdwg.mxu0
  %v492 = vmax.f32 %v484, 0.0
  %v493 = vmax.f32 %v489, 0.0
  %494 = vmatprep.subr.mxu0 0.0
  %495 = vmatpush1.msra.mxu0 %v492
  %496 = vmatprep.subr.mxu0 0.0
  %497 = vmatpush1.msra.mxu0 %v493
  %498 = vmatprep.subr.mxu0 0.0
  %499 = vmatpush1.msra.mxu0 0.0
  %500 = vmatprep.subr.mxu0 0.0
  %501 = vmatpush1.msra.mxu0 0.0
  %502 = vmatprep.subr.mxu0 0.0
  %503 = vmatpush1.msra.mxu0 0.0
  %504 = vmatprep.subr.mxu0 0.0
  %505 = vmatpush1.msra.mxu0 0.0
  %506 = vmatprep.subr.mxu0 0.0
  %507 = vmatpush1.msra.mxu0 0.0
  %508 = vmatprep.subr.mxu0 0.0
  %509 = vmatpush1.msra.mxu0 0.0
  %510 = vmatprep.subr.mxu0 0.0
  %511 = vmatpush1.msra.mxu0 0.0
  %512 = vmatprep.subr.mxu0 0.0
  %513 = vmatpush1.msra.mxu0 0.0
  %514 = vmatprep.subr.mxu0 0.0
  %515 = vmatpush1.msra.mxu0 0.0
  %516 = vmatprep.subr.mxu0 0.0
  %517 = vmatpush1.msra.mxu0 0.0
  %518 = vmatprep.subr.mxu0 0.0
  %519 = vmatpush1.msra.mxu0 0.0
  %520 = vmatprep.subr.mxu0 0.0
  %521 = vmatpush1.msra.mxu0 0.0
  %522 = vmatprep.subr.mxu0 0.0
  %523 = vmatpush1.msra.mxu0 0.0
  %524 = vmatprep.subr.mxu0 0.0
  %525 = vmatpush1.msra.mxu0 0.0
  %526 = vmatprep.subr.mxu0 0.0
  %527 = vmatpush1.msra.mxu0 0.0
  %528 = vmatprep.subr.mxu0 0.0
  %529 = vmatpush1.msra.mxu0 0.0
  %530 = vmatprep.subr.mxu0 0.0
  %531 = vmatpush1.msra.mxu0 0.0
  %532 = vmatprep.subr.mxu0 0.0
  %533 = vmatpush1.msra.mxu0 0.0
  %534 = vmatprep.subr.mxu0 0.0
  %535 = vmatpush1.msra.mxu0 0.0
  %536 = vmatprep.subr.mxu0 0.0
  %537 = vmatpush1.msra.mxu0 0.0
  %538 = vmatprep.subr.mxu0 0.0
  %539 = vmatpush1.msra.mxu0 0.0
  %540 = vmatprep.subr.mxu0 0.0
  %541 = vmatpush1.msra.mxu0 0.0
  %542 = vmatprep.subr.mxu0 0.0
  %543 = vmatpush1.msra.mxu0 0.0
  %544 = vmatprep.subr.mxu0 0.0
  %545 = vmatpush1.msra.mxu0 0.0
  %546 = vmatprep.subr.mxu0 0.0
  %547 = vmatpush1.msra.mxu0 0.0
  %548 = vmatprep.subr.mxu0 0.0
  %549 = vmatpush1.msra.mxu0 0.0
  %550 = vmatprep.subr.mxu0 0.0
  %551 = vmatpush1.msra.mxu0 0.0
  %552 = vmatprep.subr.mxu0 0.0
  %553 = vmatpush1.msra.mxu0 0.0
  %554 = vmatprep.subr.mxu0 0.0
  %555 = vmatpush1.msra.mxu0 0.0
  %556 = vmatprep.subr.mxu0 0.0
  %557 = vmatpush1.msra.mxu0 0.0
  %558 = vmatprep.mubr.f32.mxu0 0.0
  %559 = vmatmul.mubr.f32.gmra.mrb[0].mxu0 %v241
  %v560 = vpop.f32.mrb[0].mxu0
  %v561 = vadd.f32 %v58, %v560
  %v562 = vpop.f32.mrb[0].mxu0
  %563 = vmatprep.mubr.f32.mxu0 0.0
  %564 = vmatmul.mubr.f32.gmra.mrb[0].mxu0 %v244
  %v565 = vpop.f32.mrb[0].mxu0
  %v566 = vadd.f32 %v63, %v565
  %v567 = vpop.f32.mrb[0].mxu0
  %568 = vmatprep.mubr.f32.mxu0 0.0
  %569 = vmatmul.mubr.f32.gmra.mrb[0].mxu0 %v247
  %v570 = vpop.f32.mrb[0].mxu0
  %v571 = vadd.f32 %v68, %v570
  %v572 = vpop.f32.mrb[0].mxu0
  %573 = vmatprep.mubr.f32.mxu0 0.0
  %574 = vmatmul.mubr.f32.gmra.mrb[0].mxu0 %v250
  %v575 = vpop.f32.mrb[0].mxu0
  %v576 = vadd.f32 %v73, %v575
  %v577 = vpop.f32.mrb[0].mxu0
  %578 = vdwg.mxu0
  %s579 = scalar_lea.vmem %s7, 32
  %580 = vst.msk [vmem:[%s579] sm:$0xff] %vm239, %v561
  %581 = vst.msk [vmem:[%s579 + $0x8] sm:$0xff] %vm239, %v566
  %582 = vst.msk [vmem:[%s579 + $0x10] sm:$0xff] %vm239, %v571
  %583 = vst.msk [vmem:[%s579 + $0x18] sm:$0xff] %vm239, %v576
  // Predicated region
  $region30: #{tpu_custom_call.1} parent=0 // pred_check
    _
  $region31: #{tpu_custom_call.1} parent=0 // pred_check_branch
    %585 = sbr.rel (0) target = $region33
  $region32: #{tpu_custom_call.1} parent=0 // pred_region
    _
  $region33: #{tpu_custom_call.1} parent=0 // pred_fallthru
    _
  // Predicated region
  $region34: #{tpu_custom_call.1} parent=0 // pred_check
    _
  $region35: #{tpu_custom_call.1} parent=0 // pred_check_branch
    %587 = sbr.rel (0) target = $region37
  $region36: #{tpu_custom_call.1} parent=0 // pred_region
    _
  $region37: #{tpu_custom_call.1} parent=0 // pred_fallthru
    _

</llo_original>
